<compile_context>
chip_gen: v7x
topology: tpu7x:2x2x1
jax: 0.10.0
libtpu: 0.0.40
codegen_flags: <defaults>
</compile_context>

<pallas_src>
import functools

import jax
import jax.numpy as jnp
from jax.experimental import pallas as pl
from jax.experimental.pallas import tpu as pltpu


_LANES = 128
_SUBLANES = 8
_TILE_BUDGET_BYTES = 4 * 1024 * 1024     # per-block; x4 (dbl-buffered in+out) ~16 MiB
_VMEM_LIMIT_BYTES = 32 * 1024 * 1024     # explicit; safe on v5e / v6e / v7x
_SMALL_BYTES = 1 << 20                   # below this, fused XLA beats a pallas_call


def _row_block(m, n, itemsize, budget=_TILE_BUDGET_BYTES):
    """Row-strip height: whole array if it fits the budget, else a multiple of 8."""
    if m * n * itemsize <= budget:
        return m
    bm = budget // (n * itemsize)
    bm = max(_SUBLANES, (bm // _SUBLANES) * _SUBLANES)
    return min(bm, m)


# --------------------------------------------------------------------------
# K.ii = G.ii * (1 + mult_eps * I) + abs_eps * I     (row-strip tiled)
# --------------------------------------------------------------------------
def _ii_body(ii_ref, kii_ref, *, block_rows, mult_eps, abs_eps):
    i = pl.program_id(0)
    blk = ii_ref[...]
    dt = blk.dtype
    # Global indices: block origin + local iota (correct under tiling).
    row = i * block_rows + jax.lax.broadcasted_iota(jnp.int32, blk.shape, 0)
    col = jax.lax.broadcasted_iota(jnp.int32, blk.shape, 1)
    eye = (row == col).astype(dt)
    kii_ref[...] = (blk * (jnp.asarray(1.0, dt) + jnp.asarray(mult_eps, dt) * eye)
                    + jnp.asarray(abs_eps, dt) * eye)


def _stabilise_ii(G_ii, mult_eps, abs_eps):
    m, n = G_ii.shape
    itemsize = jnp.dtype(G_ii.dtype).itemsize
    bm = _row_block(m, n, itemsize)
    grid = (pl.cdiv(m, bm),)
    body = functools.partial(_ii_body, block_rows=bm,
                             mult_eps=float(mult_eps), abs_eps=float(abs_eps))
    return pl.pallas_call(
        body,
        out_shape=jax.ShapeDtypeStruct((m, n), G_ii.dtype),
        grid=grid,
        in_specs=[pl.BlockSpec((bm, n), lambda i: (i, 0))],
        out_specs=pl.BlockSpec((bm, n), lambda i: (i, 0)),
        compiler_params=pltpu.CompilerParams(
            dimension_semantics=("parallel",),
            vmem_limit_bytes=_VMEM_LIMIT_BYTES),
        cost_estimate=pl.CostEstimate(
            flops=3 * m * n, transcendentals=0,
            bytes_accessed=2 * m * n * itemsize),
    )(G_ii)


# --------------------------------------------------------------------------
# K.t = G.t * (1 + mult_eps) + abs_eps     (lane/sublane-dense layout)
# --------------------------------------------------------------------------
def _t_body(t_ref, kt_ref, *, mult_eps, abs_eps):
    x = t_ref[...]
    dt = x.dtype
    kt_ref[...] = x * jnp.asarray(1.0 + mult_eps, dt) + jnp.asarray(abs_eps, dt)


def _scale_t(G_t, mult_eps, abs_eps):
    T = G_t.size
    itemsize = jnp.dtype(G_t.dtype).itemsize
    rows = -(-T // _LANES)
    pad = rows * _LANES - T
    flat = G_t.reshape(-1)
    if pad:
        flat = jnp.pad(flat, (0, pad))
    t2d = flat.reshape(rows, _LANES)

    bm = _row_block(rows, _LANES, itemsize)
    grid = (pl.cdiv(rows, bm),)
    body = functools.partial(_t_body, mult_eps=float(mult_eps),
                             abs_eps=float(abs_eps))
    kt2d = pl.pallas_call(
        body,
        out_shape=jax.ShapeDtypeStruct((rows, _LANES), G_t.dtype),
        grid=grid,
        in_specs=[pl.BlockSpec((bm, _LANES), lambda i: (i, 0))],
        out_specs=pl.BlockSpec((bm, _LANES), lambda i: (i, 0)),
        compiler_params=pltpu.CompilerParams(
            dimension_semantics=("parallel",),
            vmem_limit_bytes=_VMEM_LIMIT_BYTES),
        cost_estimate=pl.CostEstimate(
            flops=2 * rows * _LANES, transcendentals=0,
            bytes_accessed=2 * rows * _LANES * itemsize),
    )(t2d)
    # Slice off the lane-padding before restoring the original shape.
    return kt2d.reshape(-1)[:T].reshape(G_t.shape)


# --------------------------------------------------------------------------
# Public wrapper == Kernel.forward / tuple_forward
# --------------------------------------------------------------------------
def kernel_forward(G_ii, G_ti, G_t, *, mult_eps=1e-4, abs_eps=1e-4,
                   force_pallas=False):
    """Returns (K_ii, K_ti, K_t) with the same shapes as the inputs.

    K.ti is the identity pass-through (base-class `_forward`), so G_ti is
    returned directly and never copied through VMEM.
    """
    total_bytes = (G_ii.size * jnp.dtype(G_ii.dtype).itemsize
                   + G_t.size * jnp.dtype(G_t.dtype).itemsize)
    if not force_pallas and total_bytes < _SMALL_BYTES:
        # Tiny problem: plain jnp fuses with neighbouring XLA ops and beats the
        # pallas_call launch overhead.
        eye = jnp.eye(G_ii.shape[-1], dtype=G_ii.dtype)
        K_ii = G_ii * (1.0 + mult_eps * eye) + abs_eps * eye
        K_t = G_t * (1.0 + mult_eps) + abs_eps
        return K_ii, G_ti, K_t

    K_ii = _stabilise_ii(G_ii, mult_eps, abs_eps)
    K_t = _scale_t(G_t, mult_eps, abs_eps)
    return K_ii, G_ti, K_t


def _reference(G_ii, G_ti, G_t, mult_eps=1e-4, abs_eps=1e-4):
    eye = jnp.eye(G_ii.shape[-1], dtype=G_ii.dtype)
    kii = G_ii * (1.0 + mult_eps * eye) + abs_eps * eye
    kti = G_ti
    kt = G_t * (1.0 + mult_eps) + abs_eps
    return kii, kti, kt


if __name__ == "__main__":
    key = jax.random.PRNGKey(0)
    k1, k2, k3 = jax.random.split(key, 3)

    Pi = 16          # number of inducing points
    batch, T = 2, 8  # test-point batch shape [2, 8]

    # PSD-ish inducing Gram matrix (symmetric) + ti / t blocks.
    A = jax.random.normal(k1, (Pi, Pi), dtype=jnp.float32)
    G_ii = (A @ A.T) / Pi
    G_ti = jax.random.normal(k2, (batch, T, Pi), dtype=jnp.float32)
    G_t = jax.nn.softplus(jax.random.normal(k3, (batch, T), dtype=jnp.float32))

    # force_pallas=True so the demo exercises the Pallas path even at tiny sizes.
    K_ii, K_ti, K_t = kernel_forward(G_ii, G_ti, G_t,
                                     mult_eps=1e-4, abs_eps=1e-4,
                                     force_pallas=True)
    jax.block_until_ready((K_ii, K_ti, K_t))

    # Correctness check against a pure-JAX reference.
    R_ii, R_ti, R_t = _reference(G_ii, G_ti, G_t)
    assert K_ii.shape == G_ii.shape and K_ti.shape == G_ti.shape and K_t.shape == G_t.shape
    assert jnp.allclose(K_ii, R_ii, atol=1e-6, rtol=1e-6)
    assert jnp.allclose(K_ti, R_ti, atol=1e-6, rtol=1e-6)
    assert jnp.allclose(K_t, R_t, atol=1e-6, rtol=1e-6)

    print("KERNEL_OK")
</pallas_src>

<mosaic_0001>
module attributes {stable_mosaic.version = 11 : i64} {
  func.func @_ii_body(%arg0: i32, %arg1: memref<16x16xf32, #tpu.memory_space<vmem>>, %arg2: memref<16x16xf32, #tpu.memory_space<vmem>>) attributes {dimension_semantics = [#tpu.dimension_semantics<parallel>], iteration_bounds = array<i64: 1>, scalar_prefetch = 0 : i64, scratch_operands = 0 : i64, tpu.core_type = #tpu.core_type<tc>, window_params = [{transform_indices = @transform_0, window_bounds = array<i64: 16, 16>}, {transform_indices = @transform_1, window_bounds = array<i64: 16, 16>}]} {
    %c0 = arith.constant 0 : index
    %c0_0 = arith.constant 0 : index
    %0 = vector.load %arg1[%c0, %c0_0] : memref<16x16xf32, #tpu.memory_space<vmem>>, vector<16x16xf32>
    %c16_i32 = arith.constant 16 : i32
    %1 = arith.muli %arg0, %c16_i32 : i32
    %2 = tpu.iota {dimensions = array<i32: 0>} : vector<16x16xi32>
    %3 = vector.broadcast %1 : i32 to vector<16x16xi32>
    %4 = arith.addi %3, %2 : vector<16x16xi32>
    %5 = tpu.iota {dimensions = array<i32: 1>} : vector<16x16xi32>
    %6 = arith.cmpi eq, %4, %5 : vector<16x16xi32>
    %7 = arith.extui %6 : vector<16x16xi1> to vector<16x16xi32>
    %8 = arith.sitofp %7 : vector<16x16xi32> to vector<16x16xf32>
    %cst = arith.constant 9.99999974E-5 : f32
    %9 = vector.broadcast %cst : f32 to vector<16x16xf32>
    %10 = arith.mulf %9, %8 : vector<16x16xf32>
    %cst_1 = arith.constant 1.000000e+00 : f32
    %11 = vector.broadcast %cst_1 : f32 to vector<16x16xf32>
    %12 = arith.addf %11, %10 : vector<16x16xf32>
    %13 = arith.mulf %0, %12 : vector<16x16xf32>
    %cst_2 = arith.constant 9.99999974E-5 : f32
    %14 = vector.broadcast %cst_2 : f32 to vector<16x16xf32>
    %15 = arith.mulf %14, %8 : vector<16x16xf32>
    %16 = arith.addf %13, %15 : vector<16x16xf32>
    %c0_3 = arith.constant 0 : index
    %c0_4 = arith.constant 0 : index
    %17 = vector.load %arg2[%c0_3, %c0_4] : memref<16x16xf32, #tpu.memory_space<vmem>>, vector<16x16xf32>
    tpu.vector_store %arg2[%c0_3, %c0_4], %16 {strides = array<i32>} : memref<16x16xf32, #tpu.memory_space<vmem>>, vector<16x16xf32>,
    return
  }
  func.func @transform_0(%arg0: i32) -> (i32, i32) {
    %c0_i32 = arith.constant 0 : i32
    %c0_i32_0 = arith.constant 0 : i32
    return %arg0, %c0_i32 : i32, i32
  }
  func.func @transform_1(%arg0: i32) -> (i32, i32) {
    %c0_i32 = arith.constant 0 : i32
    %c0_i32_0 = arith.constant 0 : i32
    return %arg0, %c0_i32 : i32, i32
  }
}

</mosaic_0001>

<llo_original>
// kernel: tpu_custom_call.1
$region0: #{tpu_custom_call.1}
  #allocation0 [shape = 'u32[]', space=smem, size = 0x4, offset = 0x4, fixed_abs, tag = 'smem constant byte address 0x4 - core index']
  #allocation1 [shape = 'u32[144,128]{1,0:T(1,128)}', space=vmem, size = 0x12000, scoped, tag = 'internal scratch']
  %s0 = inlined_call_operand.hbm [shape: f32[16,16], index: 0, kind: input, shape index: {}]
  %s1 = inlined_call_operand.hbm [shape: f32[16,16], index: 1, kind: output, shape index: {}]
  %s2 = sld [smem:[#allocation0]]
  $region18: #{tpu_custom_call.1} parent=0
    _
  %s4 = ssub.s32 1, %s2
  %s5 = scalar_select 0, %s4, %s2
  $region1: #{tpu_custom_call.1} parent=0
    #allocation2 [shape = 'u8[8192]{0}', space=vmem, size = 0x2000, scoped, tag = 'input window, operand 0, single buffered']
    #allocation3 [shape = 's32[1]{0}', space=sflag, size = 0x4, scoped, tag = 'scoped memory for tpu_custom_call.1']
    #allocation4 [shape = 's32[1]{0}', space=sflag, size = 0x4, scoped, tag = 'scoped memory for tpu_custom_call.1']
    #allocation5 [shape = 'u8[8192]{0}', space=vmem, size = 0x2000, scoped, tag = 'output window, operand 0, single buffered']
    %6 = vsyncpa [#allocation3], 0
    %7 = vsyncpa [#allocation4], 0
    // Predicated region
    $region2: #{tpu_custom_call.1} parent=1 // pred_check
      _
    $region3: #{tpu_custom_call.1} parent=1 // pred_check_branch
      %9 = sbr.rel (0) target = $region5
    $region4: #{tpu_custom_call.1} parent=1 // pred_region
      %s11 = ssub.s32 256, 256
      %12 = vsyncadd [#allocation3], %s11
      %s13 = sshll.u32 [#allocation2], 4
      %s14 = int_to_ptr.vmem [resolvable:$true] %s13
      %19 = dma.hbm_to_vmem [thread:$0]  %s0, 256, %s14, [#allocation3], 128, 128, 8
    $region5: #{tpu_custom_call.1} parent=1 // pred_fallthru
      _
    // Predicated region
    $region6: #{tpu_custom_call.1} parent=1 // pred_check
      _
    $region7: #{tpu_custom_call.1} parent=1 // pred_check_branch
      %21 = sbr.rel (0) target = $region9
    $region8: #{tpu_custom_call.1} parent=1 // pred_region
      %22 = dma.done [#allocation3], 256
    $region9: #{tpu_custom_call.1} parent=1 // pred_fallthru
      _
    %v23 = vld [vmem:[#allocation2] sm:$0xff]
    %v24 = vld [vmem:[#allocation2 + $0x8] sm:$0xff]
    %s25 = smul.u32 0, 16
    %v26 = vlaneseq
    %v27 = vshrl.u32 %v26, 7
    %v28 = vadd.s32 %v27, 8
    %v29 = vstv %s25
    %v30 = vadd.s32 %v29, %v27
    %v31 = vadd.s32 %v29, %v28
    %v32 = vlaneseq
    %v33 = vand.u32 %v32, 127
    %vm34 = vcmp.eq.s32.totalorder %v30, %v33
    %vm35 = vcmp.eq.s32.totalorder %v31, %v33
    %v36 = vsel %vm34, 1, 0
    %v37 = vsel %vm35, 1, 0
    %v38 = vcvt.s32.f32 %v36
    %v39 = vcvt.s32.f32 %v37
    %v40 = vmul.f32 %v38, 0.0001
    %v41 = vmul.f32 %v39, 0.0001
    %v42 = vadd.f32 %v40, 1.0
    %v43 = vadd.f32 %v41, 1.0
    %v44 = vmul.f32 %v23, %v42
    %v45 = vmul.f32 %v24, %v43
    %v46 = vadd.f32 %v44, %v40
    %v47 = vadd.f32 %v45, %v41
    %vm48 = vcmask 130048
    %49 = vst.msk [vmem:[#allocation5] sm:$0xff] %vm48, %v46
    %50 = vst.msk [vmem:[#allocation5 + $0x8] sm:$0xff] %vm48, %v47
    // Predicated region
    $region10: #{tpu_custom_call.1} parent=1 // pred_check
      _
    $region11: #{tpu_custom_call.1} parent=1 // pred_check_branch
      %52 = sbr.rel (0) target = $region13
    $region12: #{tpu_custom_call.1} parent=1 // pred_region
      %s54 = ssub.s32 256, 256
      %55 = vsyncadd [#allocation4], %s54
      %s56 = sshll.u32 [#allocation5], 4
      %s57 = int_to_ptr.vmem [resolvable:$true] %s56
      %62 = dma.vmem_to_hbm [thread:$0]  %s57, 256, %s1, [#allocation4], 128, 128, 8
    $region13: #{tpu_custom_call.1} parent=1 // pred_fallthru
      _
    // Predicated region
    $region14: #{tpu_custom_call.1} parent=1 // pred_check
      _
    $region15: #{tpu_custom_call.1} parent=1 // pred_check_branch
      %64 = sbr.rel (0) target = $region17
    $region16: #{tpu_custom_call.1} parent=1 // pred_region
      %65 = dma.done [#allocation4], 256
    $region17: #{tpu_custom_call.1} parent=1 // pred_fallthru
      _
    %66 = vsyncpa [#allocation3], 1
    %67 = vsyncpa [#allocation4], 1

</llo_original>
